<compile_context>
chip_gen: v5e
topology: v5e:2x2
jax: 0.10.0
libtpu: 0.0.40
codegen_flags: <defaults>
</compile_context>

<pallas_src>
import jax
import jax.numpy as jnp
import numpy as np
from jax.experimental import pallas as pl
from jax.experimental.pallas import tpu as pltpu


def _round_up(x, m):
    return ((x + m - 1) // m) * m


def _make_kernel(main_w):
    def kernel(x_ref, tap_ref, w01_ref, b01_ref, wt_ref, bt_ref,
               w2_ref, b2_ref, out_ref):
        # Fused main / ext-stage-1 1x1 convs (+ folded BN): one wide MXU call.
        h01 = (jnp.dot(x_ref[...], w01_ref[...],
                       preferred_element_type=jnp.float32) + b01_ref[...])
        main = h01[:, :main_w]                                      # main branch
        e1 = jnp.maximum(h01[:, main_w:], 0.0).astype(wt_ref.dtype)  # ext stage1

        # All 4 transposed-conv taps (BN scale folded into the weight) in one
        # MXU call, then BN shift + ReLU.
        t = (jnp.dot(e1, wt_ref[...], preferred_element_type=jnp.float32)
             + bt_ref[...])
        t = jnp.maximum(t, 0.0).astype(w2_ref.dtype)

        # Final 1x1 conv (+ folded BN) for all taps via block-diagonal weight.
        ext = (jnp.dot(t, w2_ref[...], preferred_element_type=jnp.float32)
               + b2_ref[...])                                 # (tm, 4*G*Cout)

        # MaxUnpool2d: route each main value to the tap its max index selects.
        tap = tap_ref[...]
        main_up = jnp.concatenate(
            [jnp.where(tap == k, main, 0.0) for k in range(4)], axis=-1)

        out_ref[...] = jnp.maximum(main_up + ext, 0.0)

    return kernel


def upsampling_bottleneck(x_nchw, max_indices_nchw, params, *,
                          tile_rows=512, compute_dtype=jnp.bfloat16):
    """x_nchw: (N, Cin, H, W) f32; max_indices_nchw: (N, Cout, H, W) int.

    Returns (N, Cout, 2H, 2W) f32 (NCHW), matching the PyTorch module."""
    N, Cin, H, W = x_nchw.shape
    Cout = params["wm"].shape[1]
    Cint = params["w1"].shape[1]
    Wout = 2 * W
    P = N * H * W

    # Lane-fold factor: pack G consecutive pixels per kernel row so the output
    # tile is >= 128 lanes wide (unmasked stores) even for small Cout.
    G = 1 if 4 * Cout >= 128 else -(-32 // Cout)          # ceil(32 / Cout)

    # NCHW -> flattened NHWC rows; bf16 activations for the MXU.
    x_flat = jnp.transpose(x_nchw, (0, 2, 3, 1)).reshape(P, Cin)
    x_flat = x_flat.astype(compute_dtype)

    # Per-pixel unpool tap id (which of the 4 positions in the 2x2 output
    # block the max index points at).  Small ints are exact in bf16.
    mi = max_indices_nchw.astype(jnp.int32)
    tap_id = ((mi // Wout) % 2) * 2 + (mi % 2)
    tap_flat = jnp.transpose(tap_id, (0, 2, 3, 1)).reshape(P, Cout)

    # Pad pixel rows so super-rows tile evenly (padded rows are discarded).
    Ps = -(-P // G)
    tms = int(min(tile_rows, _round_up(Ps, 8)))
    Ps_pad = _round_up(Ps, tms)
    P_pad = Ps_pad * G
    if P_pad != P:
        x_flat = jnp.pad(x_flat, ((0, P_pad - P), (0, 0)))
        tap_flat = jnp.pad(tap_flat, ((0, P_pad - P), (0, 0)),
                           constant_values=-1)
    tap_flat = tap_flat.astype(compute_dtype)

    x_sup = x_flat.reshape(Ps_pad, G * Cin)
    tap_sup = tap_flat.reshape(Ps_pad, G * Cout)

    # ---- Fused / block-diagonal weights (built in f32, cast to bf16). ------
    f32 = jnp.float32
    bd = jax.scipy.linalg.block_diag
    wm, w1, w2 = params["wm"], params["w1"], params["w2"]
    bm, b1, b2 = params["bm"], params["b1"], params["b2"]
    # Fold tconv BatchNorm scale into the transposed-conv weight.
    wt_s = params["wt"] * params["gt"][0][None, None, :]      # (4, Cint, Cint)
    bt = params["bt"]

    w01 = jnp.concatenate([bd(*([wm] * G)), bd(*([w1] * G))], axis=1)
    w01 = w01.astype(compute_dtype)                    # (G*Cin, G*(Cout+Cint))
    b01 = jnp.concatenate([jnp.tile(bm, (1, G)), jnp.tile(b1, (1, G))],
                          axis=1).astype(f32)

    # Tap-major tconv weight: column block k is block_diag(wt_s[k]) over G px.
    wt_all = jnp.concatenate([bd(*([wt_s[k]] * G)) for k in range(4)], axis=1)
    wt_all = wt_all.astype(compute_dtype)              # (G*Cint, 4*G*Cint)
    bt_all = jnp.tile(bt, (1, 4 * G)).astype(f32)

    w2_bd = bd(*([w2] * (4 * G))).astype(compute_dtype)  # (4*G*Cint, 4*G*Cout)
    b2_all = jnp.tile(b2, (1, 4 * G)).astype(f32)

    const = lambda shape: pl.BlockSpec(shape, lambda i: (0, 0))

    out_sup = pl.pallas_call(
        _make_kernel(G * Cout),
        out_shape=jax.ShapeDtypeStruct((Ps_pad, 4 * G * Cout), jnp.float32),
        grid=(Ps_pad // tms,),
        in_specs=[
            pl.BlockSpec((tms, G * Cin), lambda i: (i, 0)),    # x super-rows
            pl.BlockSpec((tms, G * Cout), lambda i: (i, 0)),   # unpool tap ids
            const((G * Cin, G * (Cout + Cint))),               # [Wm | W1] fused
            const((1, G * (Cout + Cint))),                     # [bm | b1]
            const((G * Cint, 4 * G * Cint)),                   # Wt (4 taps, BN-scaled)
            const((1, 4 * G * Cint)),                          # tconv BN shift
            const((4 * G * Cint, 4 * G * Cout)),               # W2 block-diag
            const((1, 4 * G * Cout)),                          # b2 (tiled)
        ],
        out_specs=pl.BlockSpec((tms, 4 * G * Cout), lambda i: (i, 0)),
        compiler_params=pltpu.CompilerParams(
            dimension_semantics=("parallel",)),
    )(x_sup, tap_sup, w01, b01, wt_all, bt_all, w2_bd, b2_all)

    # (r, k*G*Cout + g*Cout + c), pixel p = r*G+g, k = dh*2+dw
    #   -> (n, c, 2h+dh, 2w+dw)
    out = out_sup.reshape(Ps_pad, 4, G, Cout)
    out = jnp.transpose(out, (0, 2, 1, 3)).reshape(P_pad, 4, Cout)[:P]
    out = out.reshape(N, H, W, 2, 2, Cout)
    out = jnp.transpose(out, (0, 5, 1, 3, 2, 4))
    return out.reshape(N, Cout, 2 * H, 2 * W)


def make_params(key, Cin, Cout, Cint, eps=1e-5):
    """Deterministic synthetic parameters; BatchNorm (inference) is folded
    into the 1x1 convs; the tconv BN keeps a separate (scale, shift)."""
    ks = jax.random.split(key, 4)
    wm_raw = 0.1 * jax.random.normal(ks[0], (Cin, Cout), jnp.float32)
    w1_raw = 0.1 * jax.random.normal(ks[1], (Cin, Cint), jnp.float32)
    # ConvTranspose2d weight layout: (C_in, C_out, kH, kW)
    wt_raw = 0.1 * jax.random.normal(ks[2], (Cint, Cint, 2, 2), jnp.float32)
    w2_raw = 0.1 * jax.random.normal(ks[3], (Cint, Cout), jnp.float32)

    def bn(c, base):
        gamma = 1.0 + 0.1 * jnp.arange(c, dtype=jnp.float32) + base
        beta = 0.05 * jnp.arange(c, dtype=jnp.float32) - base
        mean = 0.02 * jnp.arange(c, dtype=jnp.float32)
        var = 1.0 + 0.03 * jnp.arange(c, dtype=jnp.float32)
        s = gamma / jnp.sqrt(var + eps)
        return s, beta - mean * s

    sm, bm = bn(Cout, 0.01)
    s1, b1 = bn(Cint, 0.02)
    st, btv = bn(Cint, 0.03)
    s2, b2 = bn(Cout, 0.04)

    # wt reshaped so that wt[kh*2+kw, ci, co] = wt_raw[ci, co, kh, kw]
    wt_taps = jnp.transpose(wt_raw, (2, 3, 0, 1)).reshape(4, Cint, Cint)

    return dict(
        wm=wm_raw * sm[None, :], bm=bm[None, :],
        w1=w1_raw * s1[None, :], b1=b1[None, :],
        wt=wt_taps, gt=st[None, :], bt=btv[None, :],
        w2=w2_raw * s2[None, :], b2=b2[None, :],
    )


def reference(x_nchw, mi_nchw, params, compute_dtype=jnp.bfloat16):
    """Pure-JAX reference (scatter-based MaxUnpool), with the same bf16
    rounding points as the kernel so the comparison is apples-to-apples."""
    rnd = lambda a: a.astype(compute_dtype).astype(jnp.float32)
    N, Cin, H, W = x_nchw.shape
    Cout = params["wm"].shape[1]
    Cint = params["w1"].shape[1]
    Hout, Wout = 2 * H, 2 * W

    x = rnd(x_nchw)
    wm, w1, w2 = rnd(params["wm"]), rnd(params["w1"]), rnd(params["w2"])
    wt_s = rnd(params["wt"] * params["gt"][0][None, None, :])   # (4, Cint, Cint)
    wt_khkw = wt_s.reshape(2, 2, Cint, Cint)                    # [kh, kw, ci, co]

    def cvec(v):  # (1, C) -> broadcastable over NCHW
        return v[0][None, :, None, None]

    main = jnp.einsum("nchw,cd->ndhw", x, wm) + cvec(params["bm"])
    n_b = jnp.broadcast_to(jnp.arange(N)[:, None, None, None], (N, Cout, H, W))
    c_b = jnp.broadcast_to(jnp.arange(Cout)[None, :, None, None], (N, Cout, H, W))
    main_up = jnp.zeros((N, Cout, Hout * Wout), jnp.float32)
    main_up = main_up.at[n_b, c_b, mi_nchw].set(main).reshape(N, Cout, Hout, Wout)

    e1 = rnd(jax.nn.relu(jnp.einsum("nchw,cd->ndhw", x, w1) + cvec(params["b1"])))
    t = jnp.einsum("nchw,klcd->ndhkwl", e1, wt_khkw).reshape(N, Cint, Hout, Wout)
    t = rnd(jax.nn.relu(t + cvec(params["bt"])))
    e3 = jnp.einsum("nchw,cd->ndhw", t, w2) + cvec(params["b2"])
    return jax.nn.relu(main_up + e3)


if __name__ == "__main__":
    key = jax.random.PRNGKey(0)
    N, Cin, Cout, ratio, H, W = 2, 16, 8, 4, 16, 16
    Cint = Cin // ratio

    kx, ki, kp = jax.random.split(key, 3)
    x = jax.random.normal(kx, (N, Cin, H, W), jnp.float32)

    # max_indices as produced by MaxPool2d(kernel_size=2, return_indices=True):
    # each index points into the corresponding 2x2 block of the (2H, 2W) plane.
    off = jax.random.randint(ki, (N, Cout, H, W), 0, 4)
    hh = jnp.arange(H)[None, None, :, None]
    ww = jnp.arange(W)[None, None, None, :]
    dh, dw = off // 2, off % 2
    max_indices = ((2 * hh + dh) * (2 * W) + (2 * ww + dw)).astype(jnp.int32)

    params = make_params(kp, Cin, Cout, Cint)

    out = jax.block_until_ready(upsampling_bottleneck(x, max_indices, params))

    ref = reference(x, max_indices, params)
    assert out.shape == (N, Cout, 2 * H, 2 * W)
    np.testing.assert_allclose(np.asarray(out), np.asarray(ref),
                               atol=5e-3, rtol=5e-3)
    print("KERNEL_OK")
</pallas_src>

<mosaic_0001>
module attributes {stable_mosaic.version = 11 : i64} {
  func.func @kernel(%arg0: i32, %arg1: memref<128x64xbf16, #tpu.memory_space<vmem>>, %arg2: memref<128x32xbf16, #tpu.memory_space<vmem>>, %arg3: memref<64x48xbf16, #tpu.memory_space<vmem>>, %arg4: memref<1x48xf32, #tpu.memory_space<vmem>>, %arg5: memref<16x64xbf16, #tpu.memory_space<vmem>>, %arg6: memref<1x64xf32, #tpu.memory_space<vmem>>, %arg7: memref<64x128xbf16, #tpu.memory_space<vmem>>, %arg8: memref<1x128xf32, #tpu.memory_space<vmem>>, %arg9: memref<128x128xf32, #tpu.memory_space<vmem>>) attributes {dimension_semantics = [#tpu.dimension_semantics<parallel>], iteration_bounds = array<i64: 1>, scalar_prefetch = 0 : i64, scratch_operands = 0 : i64, tpu.core_type = #tpu.core_type<tc>, window_params = [{transform_indices = @transform_0, window_bounds = array<i64: 128, 64>}, {transform_indices = @transform_1, window_bounds = array<i64: 128, 32>}, {pipeline_mode = #tpu.pipeline_mode<synchronous>, transform_indices = @transform_2, window_bounds = array<i64: 64, 48>}, {pipeline_mode = #tpu.pipeline_mode<synchronous>, transform_indices = @transform_3, window_bounds = array<i64: 1, 48>}, {pipeline_mode = #tpu.pipeline_mode<synchronous>, transform_indices = @transform_4, window_bounds = array<i64: 16, 64>}, {pipeline_mode = #tpu.pipeline_mode<synchronous>, transform_indices = @transform_5, window_bounds = array<i64: 1, 64>}, {pipeline_mode = #tpu.pipeline_mode<synchronous>, transform_indices = @transform_6, window_bounds = array<i64: 64, 128>}, {pipeline_mode = #tpu.pipeline_mode<synchronous>, transform_indices = @transform_7, window_bounds = array<i64: 1, 128>}, {transform_indices = @transform_8, window_bounds = array<i64: 128, 128>}]} {
    %c0 = arith.constant 0 : index
    %c0_0 = arith.constant 0 : index
    %0 = vector.load %arg1[%c0, %c0_0] : memref<128x64xbf16, #tpu.memory_space<vmem>>, vector<128x64xbf16>
    %c0_1 = arith.constant 0 : index
    %c0_2 = arith.constant 0 : index
    %1 = vector.load %arg3[%c0_1, %c0_2] : memref<64x48xbf16, #tpu.memory_space<vmem>>, vector<64x48xbf16>
    %cst = arith.constant dense<0.000000e+00> : vector<128x48xf32>
    %2 = tpu.matmul %0, %1, %cst {dimension_numbers = #tpu.dot_dimension_numbers<[1], [0], [0], [1], [0, 0, 1, 1], [], []>} : vector<128x64xbf16>, vector<64x48xbf16>, vector<128x48xf32> -> vector<128x48xf32>
    %c0_3 = arith.constant 0 : index
    %c0_4 = arith.constant 0 : index
    %3 = vector.load %arg4[%c0_3, %c0_4] : memref<1x48xf32, #tpu.memory_space<vmem>>, vector<1x48xf32>
    %4 = vector.broadcast %3 : vector<1x48xf32> to vector<128x48xf32>
    %5 = arith.addf %2, %4 : vector<128x48xf32>
    %6 = vector.extract_strided_slice %5 {offsets = [0, 0], sizes = [128, 32], strides = [1, 1]} : vector<128x48xf32> to vector<128x32xf32>
    %7 = vector.extract_strided_slice %5 {offsets = [0, 32], sizes = [128, 16], strides = [1, 1]} : vector<128x48xf32> to vector<128x16xf32>
    %cst_5 = arith.constant 0.000000e+00 : f32
    %8 = vector.broadcast %cst_5 : f32 to vector<128x16xf32>
    %9 = arith.maximumf %7, %8 : vector<128x16xf32>
    %10 = arith.truncf %9 : vector<128x16xf32> to vector<128x16xbf16>
    %c0_6 = arith.constant 0 : index
    %c0_7 = arith.constant 0 : index
    %11 = vector.load %arg5[%c0_6, %c0_7] : memref<16x64xbf16, #tpu.memory_space<vmem>>, vector<16x64xbf16>
    %cst_8 = arith.constant dense<0.000000e+00> : vector<128x64xf32>
    %12 = tpu.matmul %10, %11, %cst_8 {dimension_numbers = #tpu.dot_dimension_numbers<[1], [0], [0], [1], [0, 0, 1, 1], [], []>} : vector<128x16xbf16>, vector<16x64xbf16>, vector<128x64xf32> -> vector<128x64xf32>
    %c0_9 = arith.constant 0 : index
    %c0_10 = arith.constant 0 : index
    %13 = vector.load %arg6[%c0_9, %c0_10] : memref<1x64xf32, #tpu.memory_space<vmem>>, vector<1x64xf32>
    %14 = vector.broadcast %13 : vector<1x64xf32> to vector<128x64xf32>
    %15 = arith.addf %12, %14 : vector<128x64xf32>
    %cst_11 = arith.constant 0.000000e+00 : f32
    %16 = vector.broadcast %cst_11 : f32 to vector<128x64xf32>
    %17 = arith.maximumf %15, %16 : vector<128x64xf32>
    %18 = arith.truncf %17 : vector<128x64xf32> to vector<128x64xbf16>
    %c0_12 = arith.constant 0 : index
    %c0_13 = arith.constant 0 : index
    %19 = vector.load %arg7[%c0_12, %c0_13] : memref<64x128xbf16, #tpu.memory_space<vmem>>, vector<64x128xbf16>
    %cst_14 = arith.constant dense<0.000000e+00> : vector<128x128xf32>
    %20 = tpu.matmul %18, %19, %cst_14 {dimension_numbers = #tpu.dot_dimension_numbers<[1], [0], [0], [1], [0, 0, 1, 1], [], []>} : vector<128x64xbf16>, vector<64x128xbf16>, vector<128x128xf32> -> vector<128x128xf32>
    %c0_15 = arith.constant 0 : index
    %c0_16 = arith.constant 0 : index
    %21 = vector.load %arg8[%c0_15, %c0_16] : memref<1x128xf32, #tpu.memory_space<vmem>>, vector<1x128xf32>
    %22 = vector.broadcast %21 : vector<1x128xf32> to vector<128x128xf32>
    %23 = arith.addf %20, %22 : vector<128x128xf32>
    %c0_17 = arith.constant 0 : index
    %c0_18 = arith.constant 0 : index
    %24 = vector.load %arg2[%c0_17, %c0_18] : memref<128x32xbf16, #tpu.memory_space<vmem>>, vector<128x32xbf16>
    %cst_19 = arith.constant 0.000000e+00 : bf16
    %25 = vector.broadcast %cst_19 : bf16 to vector<128x32xbf16>
    %26 = arith.cmpf oeq, %24, %25 : vector<128x32xbf16>
    %cst_20 = arith.constant 0.000000e+00 : f32
    %27 = vector.broadcast %cst_20 : f32 to vector<128x32xf32>
    %28 = arith.select %26, %6, %27 : vector<128x32xi1>, vector<128x32xf32>
    %cst_21 = arith.constant 1.000000e+00 : bf16
    %29 = vector.broadcast %cst_21 : bf16 to vector<128x32xbf16>
    %30 = arith.cmpf oeq, %24, %29 : vector<128x32xbf16>
    %cst_22 = arith.constant 0.000000e+00 : f32
    %31 = vector.broadcast %cst_22 : f32 to vector<128x32xf32>
    %32 = arith.select %30, %6, %31 : vector<128x32xi1>, vector<128x32xf32>
    %cst_23 = arith.constant 2.000000e+00 : bf16
    %33 = vector.broadcast %cst_23 : bf16 to vector<128x32xbf16>
    %34 = arith.cmpf oeq, %24, %33 : vector<128x32xbf16>
    %cst_24 = arith.constant 0.000000e+00 : f32
    %35 = vector.broadcast %cst_24 : f32 to vector<128x32xf32>
    %36 = arith.select %34, %6, %35 : vector<128x32xi1>, vector<128x32xf32>
    %cst_25 = arith.constant 3.000000e+00 : bf16
    %37 = vector.broadcast %cst_25 : bf16 to vector<128x32xbf16>
    %38 = arith.cmpf oeq, %24, %37 : vector<128x32xbf16>
    %cst_26 = arith.constant 0.000000e+00 : f32
    %39 = vector.broadcast %cst_26 : f32 to vector<128x32xf32>
    %40 = arith.select %38, %6, %39 : vector<128x32xi1>, vector<128x32xf32>
    %41 = tpu.concatenate %28, %32, %36, %40 in 1 : vector<128x32xf32>, vector<128x32xf32>, vector<128x32xf32>, vector<128x32xf32> -> vector<128x128xf32>
    %42 = arith.addf %41, %23 : vector<128x128xf32>
    %cst_27 = arith.constant 0.000000e+00 : f32
    %43 = vector.broadcast %cst_27 : f32 to vector<128x128xf32>
    %44 = arith.maximumf %42, %43 : vector<128x128xf32>
    %c0_28 = arith.constant 0 : index
    %c0_29 = arith.constant 0 : index
    %45 = vector.load %arg9[%c0_28, %c0_29] : memref<128x128xf32, #tpu.memory_space<vmem>>, vector<128x128xf32>
    tpu.vector_store %arg9[%c0_28, %c0_29], %44 {strides = array<i32>} : memref<128x128xf32, #tpu.memory_space<vmem>>, vector<128x128xf32>,
    return
  }
  func.func @transform_0(%arg0: i32) -> (i32, i32) {
    %c0_i32 = arith.constant 0 : i32
    %c0_i32_0 = arith.constant 0 : i32
    return %arg0, %c0_i32 : i32, i32
  }
  func.func @transform_1(%arg0: i32) -> (i32, i32) {
    %c0_i32 = arith.constant 0 : i32
    %c0_i32_0 = arith.constant 0 : i32
    return %arg0, %c0_i32 : i32, i32
  }
  func.func @transform_2(%arg0: i32) -> (i32, i32) {
    %c0_i32 = arith.constant 0 : i32
    %c0_i32_0 = arith.constant 0 : i32
    %c0_i32_1 = arith.constant 0 : i32
    return %c0_i32, %c0_i32_0 : i32, i32
  }
  func.func @transform_3(%arg0: i32) -> (i32, i32) {
    %c0_i32 = arith.constant 0 : i32
    %c0_i32_0 = arith.constant 0 : i32
    %c0_i32_1 = arith.constant 0 : i32
    return %c0_i32, %c0_i32_0 : i32, i32
  }
  func.func @transform_4(%arg0: i32) -> (i32, i32) {
    %c0_i32 = arith.constant 0 : i32
    %c0_i32_0 = arith.constant 0 : i32
    %c0_i32_1 = arith.constant 0 : i32
    return %c0_i32, %c0_i32_0 : i32, i32
  }
  func.func @transform_5(%arg0: i32) -> (i32, i32) {
    %c0_i32 = arith.constant 0 : i32
    %c0_i32_0 = arith.constant 0 : i32
    %c0_i32_1 = arith.constant 0 : i32
    return %c0_i32, %c0_i32_0 : i32, i32
  }
  func.func @transform_6(%arg0: i32) -> (i32, i32) {
    %c0_i32 = arith.constant 0 : i32
    %c0_i32_0 = arith.constant 0 : i32
    %c0_i32_1 = arith.constant 0 : i32
    return %c0_i32, %c0_i32_0 : i32, i32
  }
  func.func @transform_7(%arg0: i32) -> (i32, i32) {
    %c0_i32 = arith.constant 0 : i32
    %c0_i32_0 = arith.constant 0 : i32
    %c0_i32_1 = arith.constant 0 : i32
    return %c0_i32, %c0_i32_0 : i32, i32
  }
  func.func @transform_8(%arg0: i32) -> (i32, i32) {
    %c0_i32 = arith.constant 0 : i32
    %c0_i32_0 = arith.constant 0 : i32
    return %arg0, %c0_i32 : i32, i32
  }
}

</mosaic_0001>

<llo_original>
// kernel: tpu_custom_call.1
$region0: #{tpu_custom_call.1}
  #allocation0 [shape = 'u32[]', space=smem, size = 0x4, offset = 0x4, fixed_abs, tag = 'smem constant byte address 0x4 - core index']
  #allocation1 [shape = 'u32[72,128]{1,0:T(1,128)}', space=vmem, size = 0x9000, scoped, tag = 'internal scratch']
  %s0 = inlined_call_operand.vmem [shape: bf16[128,64], index: 0, kind: input, shape index: {}]
  %s1 = inlined_call_operand.vmem [shape: bf16[128,32], index: 1, kind: input, shape index: {}]
  %s2 = inlined_call_operand.vmem [shape: bf16[64,48], index: 2, kind: input, shape index: {}]
  %s3 = inlined_call_operand.vmem [shape: f32[1,48], index: 3, kind: input, shape index: {}]
  %s4 = inlined_call_operand.vmem [shape: bf16[16,64], index: 4, kind: input, shape index: {}]
  %s5 = inlined_call_operand.vmem [shape: f32[1,64], index: 5, kind: input, shape index: {}]
  %s6 = inlined_call_operand.vmem [shape: bf16[64,128], index: 6, kind: input, shape index: {}]
  %s7 = inlined_call_operand.vmem [shape: f32[1,128], index: 7, kind: input, shape index: {}]
  %s8 = inlined_call_operand.hbm [shape: f32[128,128], index: 8, kind: output, shape index: {}]
  %s9 = sld [smem:[#allocation0]]
  $region42: #{tpu_custom_call.1} parent=0
    _
  %s11 = ssub.s32 1, %s9
  %s12 = scalar_select 0, %s11, %s9
  $region1: #{tpu_custom_call.1} parent=0
    #allocation2 [shape = 'u8[65536]{0}', space=vmem, size = 0x10000, scoped, tag = 'output window, operand 0, single buffered']
    #allocation3 [shape = 's32[1]{0}', space=sflag, size = 0x4, scoped, tag = 'scoped memory for tpu_custom_call.1']
    %13 = vsyncpa [#allocation3], 0
    // Predicated region
    $region2: #{tpu_custom_call.1} parent=1 // pred_check
      _
    $region3: #{tpu_custom_call.1} parent=1 // pred_check_branch
      %15 = sbr.rel (0) target = $region5
    $region4: #{tpu_custom_call.1} parent=1 // pred_region
      _
    $region5: #{tpu_custom_call.1} parent=1 // pred_fallthru
      _
    // Predicated region
    $region6: #{tpu_custom_call.1} parent=1 // pred_check
      _
    $region7: #{tpu_custom_call.1} parent=1 // pred_check_branch
      %17 = sbr.rel (0) target = $region9
    $region8: #{tpu_custom_call.1} parent=1 // pred_region
      _
    $region9: #{tpu_custom_call.1} parent=1 // pred_fallthru
      _
    // Predicated region
    $region10: #{tpu_custom_call.1} parent=1 // pred_check
      _
    $region11: #{tpu_custom_call.1} parent=1 // pred_check_branch
      %19 = sbr.rel (0) target = $region13
    $region12: #{tpu_custom_call.1} parent=1 // pred_region
      _
    $region13: #{tpu_custom_call.1} parent=1 // pred_fallthru
      _
    // Predicated region
    $region14: #{tpu_custom_call.1} parent=1 // pred_check
      _
    $region15: #{tpu_custom_call.1} parent=1 // pred_check_branch
      %21 = sbr.rel (0) target = $region17
    $region16: #{tpu_custom_call.1} parent=1 // pred_region
      _
    $region17: #{tpu_custom_call.1} parent=1 // pred_fallthru
      _
    // Predicated region
    $region18: #{tpu_custom_call.1} parent=1 // pred_check
      _
    $region19: #{tpu_custom_call.1} parent=1 // pred_check_branch
      %23 = sbr.rel (0) target = $region21
    $region20: #{tpu_custom_call.1} parent=1 // pred_region
      _
    $region21: #{tpu_custom_call.1} parent=1 // pred_fallthru
      _
    // Predicated region
    $region22: #{tpu_custom_call.1} parent=1 // pred_check
      _
    $region23: #{tpu_custom_call.1} parent=1 // pred_check_branch
      %25 = sbr.rel (0) target = $region25
    $region24: #{tpu_custom_call.1} parent=1 // pred_region
      _
    $region25: #{tpu_custom_call.1} parent=1 // pred_fallthru
      _
    // Predicated region
    $region26: #{tpu_custom_call.1} parent=1 // pred_check
      _
    $region27: #{tpu_custom_call.1} parent=1 // pred_check_branch
      %27 = sbr.rel (0) target = $region29
    $region28: #{tpu_custom_call.1} parent=1 // pred_region
      _
    $region29: #{tpu_custom_call.1} parent=1 // pred_fallthru
      _
    // Predicated region
    $region30: #{tpu_custom_call.1} parent=1 // pred_check
      _
    $region31: #{tpu_custom_call.1} parent=1 // pred_check_branch
      %29 = sbr.rel (0) target = $region33
    $region32: #{tpu_custom_call.1} parent=1 // pred_region
      _
    $region33: #{tpu_custom_call.1} parent=1 // pred_fallthru
      _
    %v31 = vld [vmem:[%s0] sm:$0xf]
    %v32 = vld [vmem:[%s0 + $0x4] sm:$0xf]
    %v33 = vld [vmem:[%s0 + $0x8] sm:$0xf]
    %v34 = vld [vmem:[%s0 + $0xc] sm:$0xf]
    %v35 = vld [vmem:[%s0 + $0x10] sm:$0xf]
    %v36 = vld [vmem:[%s0 + $0x14] sm:$0xf]
    %v37 = vld [vmem:[%s0 + $0x18] sm:$0xf]
    %v38 = vld [vmem:[%s0 + $0x1c] sm:$0xf]
    %v39 = vld [vmem:[%s0 + $0x20] sm:$0xf]
    %v40 = vld [vmem:[%s0 + $0x24] sm:$0xf]
    %v41 = vld [vmem:[%s0 + $0x28] sm:$0xf]
    %v42 = vld [vmem:[%s0 + $0x2c] sm:$0xf]
    %v43 = vld [vmem:[%s0 + $0x30] sm:$0xf]
    %v44 = vld [vmem:[%s0 + $0x34] sm:$0xf]
    %v45 = vld [vmem:[%s0 + $0x38] sm:$0xf]
    %v46 = vld [vmem:[%s0 + $0x3c] sm:$0xf]
    %v47 = vld [vmem:[%s2] sm:$0xf]
    %v48 = vld [vmem:[%s2 + $0x4] sm:$0xf]
    %v49 = vld [vmem:[%s2 + $0x8] sm:$0xf]
    %v50 = vld [vmem:[%s2 + $0xc] sm:$0xf]
    %v51 = vld [vmem:[%s2 + $0x10] sm:$0xf]
    %v52 = vld [vmem:[%s2 + $0x14] sm:$0xf]
    %v53 = vld [vmem:[%s2 + $0x18] sm:$0xf]
    %v54 = vld [vmem:[%s2 + $0x1c] sm:$0xf]
    %v55 = vld [vmem:[%s3] sm:$0x1]
    %v57 = vperm.slane %v55, 0
    %v75 = vunpack.c.l.b16 %v31
    %v76 = vunpack.c.l.b16 %v32
    %v77 = vunpack.c.l.b16 %v33
    %v78 = vunpack.c.l.b16 %v34
    %v79 = vunpack.c.l.b16 %v35
    %v80 = vunpack.c.l.b16 %v36
    %v81 = vunpack.c.l.b16 %v37
    %v82 = vunpack.c.l.b16 %v38
    %v83 = vunpack.c.l.b16 %v39
    %v84 = vunpack.c.l.b16 %v40
    %v85 = vunpack.c.l.b16 %v41
    %v86 = vunpack.c.l.b16 %v42
    %v87 = vunpack.c.l.b16 %v43
    %v88 = vunpack.c.l.b16 %v44
    %v89 = vunpack.c.l.b16 %v45
    %v90 = vunpack.c.l.b16 %v46
    %v91 = vpack.c.b16 %v76, %v75
    %v92 = vpack.c.b16 %v78, %v77
    %v93 = vpack.c.b16 %v80, %v79
    %v94 = vpack.c.b16 %v82, %v81
    %v95 = vpack.c.b16 %v84, %v83
    %v96 = vpack.c.b16 %v86, %v85
    %v97 = vpack.c.b16 %v88, %v87
    %v98 = vpack.c.b16 %v90, %v89
    %v107 = vunpack.c.l.b16 %v47
    %v108 = vunpack.c.l.b16 %v48
    %v109 = vunpack.c.l.b16 %v49
    %v110 = vunpack.c.l.b16 %v50
    %v111 = vunpack.c.l.b16 %v51
    %v112 = vunpack.c.l.b16 %v52
    %v113 = vunpack.c.l.b16 %v53
    %v114 = vunpack.c.l.b16 %v54
    %v115 = vpack.c.b16 %v108, %v107
    %v116 = vpack.c.b16 %v110, %v109
    %v117 = vpack.c.b16 %v112, %v111
    %v118 = vpack.c.b16 %v114, %v113
    %vm123 = vcmask 523264
    %v125 = vsel %vm123, %v91, 0
    %v128 = vsel %vm123, %v92, 0
    %v131 = vsel %vm123, %v93, 0
    %v134 = vsel %vm123, %v94, 0
    %v137 = vsel %vm123, %v95, 0
    %v140 = vsel %vm123, %v96, 0
    %v143 = vsel %vm123, %v97, 0
    %v146 = vsel %vm123, %v98, 0
    %148 = vmatpush.bf16.msra.mxu0 0
    %149 = vmatpush.bf16.msra.mxu0 0
    %150 = vmatpush.bf16.msra.mxu0 0
    %151 = vmatpush.bf16.msra.mxu0 0
    %152 = vmatpush.bf16.msra.mxu0 %v118
    %153 = vmatpush.bf16.msra.mxu0 %v117
    %154 = vmatpush.bf16.msra.mxu0 %v116
    %155 = vmatpush.bf16.msra.mxu0 %v115
    %156 = vmatmul.bf16.gmra.mxu0 %v125
    %v157 = vpop.f32.mrf.mxu0
    %v158 = vadd.f32 %v57, %v157
    %v159 = vpop.f32.mrf.mxu0
    %v160 = vadd.f32 %v57, %v159
    %161 = vmatmul.bf16.gmra.mxu0 %v128
    %v162 = vpop.f32.mrf.mxu0
    %v163 = vadd.f32 %v57, %v162
    %v164 = vpop.f32.mrf.mxu0
    %v165 = vadd.f32 %v57, %v164
    %166 = vmatmul.bf16.gmra.mxu0 %v131
    %v167 = vpop.f32.mrf.mxu0
    %v168 = vadd.f32 %v57, %v167
    %v169 = vpop.f32.mrf.mxu0
    %v170 = vadd.f32 %v57, %v169
    %171 = vmatmul.bf16.gmra.mxu0 %v134
    %v172 = vpop.f32.mrf.mxu0
    %v173 = vadd.f32 %v57, %v172
    %v174 = vpop.f32.mrf.mxu0
    %v175 = vadd.f32 %v57, %v174
    %176 = vmatmul.bf16.gmra.mxu0 %v137
    %v177 = vpop.f32.mrf.mxu0
    %v178 = vadd.f32 %v57, %v177
    %v179 = vpop.f32.mrf.mxu0
    %v180 = vadd.f32 %v57, %v179
    %181 = vmatmul.bf16.gmra.mxu0 %v140
    %v182 = vpop.f32.mrf.mxu0
    %v183 = vadd.f32 %v57, %v182
    %v184 = vpop.f32.mrf.mxu0
    %v185 = vadd.f32 %v57, %v184
    %186 = vmatmul.bf16.gmra.mxu0 %v143
    %v187 = vpop.f32.mrf.mxu0
    %v188 = vadd.f32 %v57, %v187
    %v189 = vpop.f32.mrf.mxu0
    %v190 = vadd.f32 %v57, %v189
    %191 = vmatmul.bf16.gmra.mxu0 %v146
    %v192 = vpop.f32.mrf.mxu0
    %v193 = vadd.f32 %v57, %v192
    %v194 = vpop.f32.mrf.mxu0
    %v195 = vadd.f32 %v57, %v194
    %196 = vdwg.mxu0
    %v197 = vmax.f32 %v158, 0.0
    %v198 = vmax.f32 %v160, 0.0
    %v199 = vmax.f32 %v163, 0.0
    %v200 = vmax.f32 %v165, 0.0
    %v201 = vmax.f32 %v168, 0.0
    %v202 = vmax.f32 %v170, 0.0
    %v203 = vmax.f32 %v173, 0.0
    %v204 = vmax.f32 %v175, 0.0
    %v205 = vmax.f32 %v178, 0.0
    %v206 = vmax.f32 %v180, 0.0
    %v207 = vmax.f32 %v183, 0.0
    %v208 = vmax.f32 %v185, 0.0
    %v209 = vmax.f32 %v188, 0.0
    %v210 = vmax.f32 %v190, 0.0
    %v211 = vmax.f32 %v193, 0.0
    %v212 = vmax.f32 %v195, 0.0
    %v213 = vpack.c.bf16 %v198, %v197
    %v214 = vpack.c.bf16 %v200, %v199
    %v215 = vpack.c.bf16 %v202, %v201
    %v216 = vpack.c.bf16 %v204, %v203
    %v217 = vpack.c.bf16 %v206, %v205
    %v218 = vpack.c.bf16 %v208, %v207
    %v219 = vpack.c.bf16 %v210, %v209
    %v220 = vpack.c.bf16 %v212, %v211
    %v221 = vld [vmem:[%s4] sm:$0xf]
    %v222 = vld [vmem:[%s4 + $0x4] sm:$0xf]
    %v223 = vld [vmem:[%s5] sm:$0x1]
    %v225 = vperm.slane %v223, 0
    %235 = vrot.lane.b32.xlu0 %v213, 96
    %v236 = vpop.permute.xlu0 %235
    %237 = vrot.lane.b32.xlu0 %v214, 96
    %v238 = vpop.permute.xlu0 %237
    %239 = vrot.lane.b32.xlu0 %v215, 96
    %v240 = vpop.permute.xlu0 %239
    %241 = vrot.lane.b32.xlu0 %v216, 96
    %v242 = vpop.permute.xlu0 %241
    %243 = vrot.lane.b32.xlu0 %v217, 96
    %v244 = vpop.permute.xlu0 %243
    %245 = vrot.lane.b32.xlu0 %v218, 96
    %v246 = vpop.permute.xlu0 %245
    %247 = vrot.lane.b32.xlu0 %v219, 96
    %v248 = vpop.permute.xlu0 %247
    %249 = vrot.lane.b32.xlu0 %v220, 96
    %v250 = vpop.permute.xlu0 %249
    %v253 = vunpack.c.l.b16 %v221
    %v254 = vunpack.c.l.b16 %v222
    %v255 = vpack.c.b16 %v254, %v253
    %vm257 = vcmask 130048
    %v259 = vsel %vm257, %v236, 0
    %v262 = vsel %vm257, %v238, 0
    %v265 = vsel %vm257, %v240, 0
    %v268 = vsel %vm257, %v242, 0
    %v271 = vsel %vm257, %v244, 0
    %v274 = vsel %vm257, %v246, 0
    %v277 = vsel %vm257, %v248, 0
    %v280 = vsel %vm257, %v250, 0
    %282 = vmatpush.bf16.msra.mxu0 0
    %283 = vmatpush.bf16.msra.mxu0 0
    %284 = vmatpush.bf16.msra.mxu0 0
    %285 = vmatpush.bf16.msra.mxu0 0
    %286 = vmatpush.bf16.msra.mxu0 0
    %287 = vmatpush.bf16.msra.mxu0 0
    %288 = vmatpush.bf16.msra.mxu0 0
    %289 = vmatpush.bf16.msra.mxu0 %v255
    %290 = vmatmul.bf16.gmra.mxu0 %v259
    %v291 = vpop.f32.mrf.mxu0
    %v292 = vadd.f32 %v225, %v291
    %v293 = vpop.f32.mrf.mxu0
    %v294 = vadd.f32 %v225, %v293
    %295 = vmatmul.bf16.gmra.mxu0 %v262
    %v296 = vpop.f32.mrf.mxu0
    %v297 = vadd.f32 %v225, %v296
    %v298 = vpop.f32.mrf.mxu0
    %v299 = vadd.f32 %v225, %v298
    %300 = vmatmul.bf16.gmra.mxu0 %v265
    %v301 = vpop.f32.mrf.mxu0
    %v302 = vadd.f32 %v225, %v301
    %v303 = vpop.f32.mrf.mxu0
    %v304 = vadd.f32 %v225, %v303
    %305 = vmatmul.bf16.gmra.mxu0 %v268
    %v306 = vpop.f32.mrf.mxu0
    %v307 = vadd.f32 %v225, %v306
    %v308 = vpop.f32.mrf.mxu0
    %v309 = vadd.f32 %v225, %v308
    %310 = vmatmul.bf16.gmra.mxu0 %v271
    %v311 = vpop.f32.mrf.mxu0
    %v312 = vadd.f32 %v225, %v311
    %v313 = vpop.f32.mrf.mxu0
    %v314 = vadd.f32 %v225, %v313
    %315 = vmatmul.bf16.gmra.mxu0 %v274
    %v316 = vpop.f32.mrf.mxu0
    %v317 = vadd.f32 %v225, %v316
    %v318 = vpop.f32.mrf.mxu0
    %v319 = vadd.f32 %v225, %v318
    %320 = vmatmul.bf16.gmra.mxu0 %v277
    %v321 = vpop.f32.mrf.mxu0
    %v322 = vadd.f32 %v225, %v321
    %v323 = vpop.f32.mrf.mxu0
    %v324 = vadd.f32 %v225, %v323
    %325 = vmatmul.bf16.gmra.mxu0 %v280
    %v326 = vpop.f32.mrf.mxu0
    %v327 = vadd.f32 %v225, %v326
    %v328 = vpop.f32.mrf.mxu0
    %v329 = vadd.f32 %v225, %v328
    %330 = vdwg.mxu0
    %v331 = vmax.f32 %v292, 0.0
    %v332 = vmax.f32 %v294, 0.0
    %v333 = vmax.f32 %v297, 0.0
    %v334 = vmax.f32 %v299, 0.0
    %v335 = vmax.f32 %v302, 0.0
    %v336 = vmax.f32 %v304, 0.0
    %v337 = vmax.f32 %v307, 0.0
    %v338 = vmax.f32 %v309, 0.0
    %v339 = vmax.f32 %v312, 0.0
    %v340 = vmax.f32 %v314, 0.0
    %v341 = vmax.f32 %v317, 0.0
    %v342 = vmax.f32 %v319, 0.0
    %v343 = vmax.f32 %v322, 0.0
    %v344 = vmax.f32 %v324, 0.0
    %v345 = vmax.f32 %v327, 0.0
    %v346 = vmax.f32 %v329, 0.0
    %v347 = vpack.c.bf16 %v332, %v331
    %v348 = vpack.c.bf16 %v334, %v333
    %v349 = vpack.c.bf16 %v336, %v335
    %v350 = vpack.c.bf16 %v338, %v337
    %v351 = vpack.c.bf16 %v340, %v339
    %v352 = vpack.c.bf16 %v342, %v341
    %v353 = vpack.c.bf16 %v344, %v343
    %v354 = vpack.c.bf16 %v346, %v345
    %v355 = vld [vmem:[%s6] sm:$0xf]
    %v356 = vld [vmem:[%s6 + $0x4] sm:$0xf]
    %v357 = vld [vmem:[%s6 + $0x8] sm:$0xf]
    %v358 = vld [vmem:[%s6 + $0xc] sm:$0xf]
    %v359 = vld [vmem:[%s6 + $0x10] sm:$0xf]
    %v360 = vld [vmem:[%s6 + $0x14] sm:$0xf]
    %v361 = vld [vmem:[%s6 + $0x18] sm:$0xf]
    %v362 = vld [vmem:[%s6 + $0x1c] sm:$0xf]
    %v363 = vld [vmem:[%s7] sm:$0x1]
    %v365 = vperm.slane %v363, 0
    %v375 = vunpack.c.l.b16 %v355
    %v376 = vunpack.c.l.b16 %v356
    %v377 = vunpack.c.l.b16 %v357
    %v378 = vunpack.c.l.b16 %v358
    %v379 = vunpack.c.l.b16 %v359
    %v380 = vunpack.c.l.b16 %v360
    %v381 = vunpack.c.l.b16 %v361
    %v382 = vunpack.c.l.b16 %v362
    %v383 = vpack.c.b16 %v376, %v375
    %v384 = vpack.c.b16 %v378, %v377
    %v385 = vpack.c.b16 %v380, %v379
    %v386 = vpack.c.b16 %v382, %v381
    %v392 = vsel %vm123, %v347, 0
    %v395 = vsel %vm123, %v348, 0
    %v398 = vsel %vm123, %v349, 0
    %v401 = vsel %vm123, %v350, 0
    %v404 = vsel %vm123, %v351, 0
    %v407 = vsel %vm123, %v352, 0
    %v410 = vsel %vm123, %v353, 0
    %v413 = vsel %vm123, %v354, 0
    %415 = vmatpush.bf16.msra.mxu0 0
    %416 = vmatpush.bf16.msra.mxu0 0
    %417 = vmatpush.bf16.msra.mxu0 0
    %418 = vmatpush.bf16.msra.mxu0 0
    %419 = vmatpush.bf16.msra.mxu0 %v386
    %420 = vmatpush.bf16.msra.mxu0 %v385
    %421 = vmatpush.bf16.msra.mxu0 %v384
    %422 = vmatpush.bf16.msra.mxu0 %v383
    %423 = vmatmul.bf16.gmra.mxu0 %v392
    %v424 = vpop.f32.mrf.mxu0
    %v425 = vadd.f32 %v365, %v424
    %v426 = vpop.f32.mrf.mxu0
    %v427 = vadd.f32 %v365, %v426
    %428 = vmatmul.bf16.gmra.mxu0 %v395
    %v429 = vpop.f32.mrf.mxu0
    %v430 = vadd.f32 %v365, %v429
    %v431 = vpop.f32.mrf.mxu0
    %v432 = vadd.f32 %v365, %v431
    %433 = vmatmul.bf16.gmra.mxu0 %v398
    %v434 = vpop.f32.mrf.mxu0
    %v435 = vadd.f32 %v365, %v434
    %v436 = vpop.f32.mrf.mxu0
    %v437 = vadd.f32 %v365, %v436
    %438 = vmatmul.bf16.gmra.mxu0 %v401
    %v439 = vpop.f32.mrf.mxu0
    %v440 = vadd.f32 %v365, %v439
    %v441 = vpop.f32.mrf.mxu0
    %v442 = vadd.f32 %v365, %v441
    %443 = vmatmul.bf16.gmra.mxu0 %v404
    %v444 = vpop.f32.mrf.mxu0
    %v445 = vadd.f32 %v365, %v444
    %v446 = vpop.f32.mrf.mxu0
    %v447 = vadd.f32 %v365, %v446
    %448 = vmatmul.bf16.gmra.mxu0 %v407
    %v449 = vpop.f32.mrf.mxu0
    %v450 = vadd.f32 %v365, %v449
    %v451 = vpop.f32.mrf.mxu0
    %v452 = vadd.f32 %v365, %v451
    %453 = vmatmul.bf16.gmra.mxu0 %v410
    %v454 = vpop.f32.mrf.mxu0
    %v455 = vadd.f32 %v365, %v454
    %v456 = vpop.f32.mrf.mxu0
    %v457 = vadd.f32 %v365, %v456
    %458 = vmatmul.bf16.gmra.mxu0 %v413
    %v459 = vpop.f32.mrf.mxu0
    %v460 = vadd.f32 %v365, %v459
    %v461 = vpop.f32.mrf.mxu0
    %v462 = vadd.f32 %v365, %v461
    %463 = vdwg.mxu0
    %v464 = vld [vmem:[%s1] sm:$0xf]
    %v465 = vld [vmem:[%s1 + $0x4] sm:$0xf]
    %v466 = vld [vmem:[%s1 + $0x8] sm:$0xf]
    %v467 = vld [vmem:[%s1 + $0xc] sm:$0xf]
    %v468 = vld [vmem:[%s1 + $0x10] sm:$0xf]
    %v469 = vld [vmem:[%s1 + $0x14] sm:$0xf]
    %v470 = vld [vmem:[%s1 + $0x18] sm:$0xf]
    %v471 = vld [vmem:[%s1 + $0x1c] sm:$0xf]
    %v472 = vld [vmem:[%s1 + $0x20] sm:$0xf]
    %v473 = vld [vmem:[%s1 + $0x24] sm:$0xf]
    %v474 = vld [vmem:[%s1 + $0x28] sm:$0xf]
    %v475 = vld [vmem:[%s1 + $0x2c] sm:$0xf]
    %v476 = vld [vmem:[%s1 + $0x30] sm:$0xf]
    %v477 = vld [vmem:[%s1 + $0x34] sm:$0xf]
    %v478 = vld [vmem:[%s1 + $0x38] sm:$0xf]
    %v479 = vld [vmem:[%s1 + $0x3c] sm:$0xf]
    %v480 = vunpack.c.l.bf16 %v464
    %v481 = vunpack.c.l.bf16 %v465
    %v482 = vunpack.c.l.bf16 %v466
    %v483 = vunpack.c.l.bf16 %v467
    %v484 = vunpack.c.l.bf16 %v468
    %v485 = vunpack.c.l.bf16 %v469
    %v486 = vunpack.c.l.bf16 %v470
    %v487 = vunpack.c.l.bf16 %v471
    %v488 = vunpack.c.l.bf16 %v472
    %v489 = vunpack.c.l.bf16 %v473
    %v490 = vunpack.c.l.bf16 %v474
    %v491 = vunpack.c.l.bf16 %v475
    %v492 = vunpack.c.l.bf16 %v476
    %v493 = vunpack.c.l.bf16 %v477
    %v494 = vunpack.c.l.bf16 %v478
    %v495 = vunpack.c.l.bf16 %v479
    %vm496 = vcmp.eq.f32.partialorder %v480, 0.0
    %vm497 = vcmp.eq.f32.partialorder %v481, 0.0
    %vm498 = vcmp.eq.f32.partialorder %v482, 0.0
    %vm499 = vcmp.eq.f32.partialorder %v483, 0.0
    %vm500 = vcmp.eq.f32.partialorder %v484, 0.0
    %vm501 = vcmp.eq.f32.partialorder %v485, 0.0
    %vm502 = vcmp.eq.f32.partialorder %v486, 0.0
    %vm503 = vcmp.eq.f32.partialorder %v487, 0.0
    %vm504 = vcmp.eq.f32.partialorder %v488, 0.0
    %vm505 = vcmp.eq.f32.partialorder %v489, 0.0
    %vm506 = vcmp.eq.f32.partialorder %v490, 0.0
    %vm507 = vcmp.eq.f32.partialorder %v491, 0.0
    %vm508 = vcmp.eq.f32.partialorder %v492, 0.0
    %vm509 = vcmp.eq.f32.partialorder %v493, 0.0
    %vm510 = vcmp.eq.f32.partialorder %v494, 0.0
    %vm511 = vcmp.eq.f32.partialorder %v495, 0.0
    %v512 = vsel %vm496, %v158, 0.0
    %v513 = vsel %vm497, %v160, 0.0
    %v514 = vsel %vm498, %v163, 0.0
    %v515 = vsel %vm499, %v165, 0.0
    %v516 = vsel %vm500, %v168, 0.0
    %v517 = vsel %vm501, %v170, 0.0
    %v518 = vsel %vm502, %v173, 0.0
    %v519 = vsel %vm503, %v175, 0.0
    %v520 = vsel %vm504, %v178, 0.0
    %v521 = vsel %vm505, %v180, 0.0
    %v522 = vsel %vm506, %v183, 0.0
    %v523 = vsel %vm507, %v185, 0.0
    %v524 = vsel %vm508, %v188, 0.0
    %v525 = vsel %vm509, %v190, 0.0
    %v526 = vsel %vm510, %v193, 0.0
    %v527 = vsel %vm511, %v195, 0.0
    %vm528 = vcmp.eq.f32.partialorder %v480, 1.0
    %vm529 = vcmp.eq.f32.partialorder %v481, 1.0
    %vm530 = vcmp.eq.f32.partialorder %v482, 1.0
    %vm531 = vcmp.eq.f32.partialorder %v483, 1.0
    %vm532 = vcmp.eq.f32.partialorder %v484, 1.0
    %vm533 = vcmp.eq.f32.partialorder %v485, 1.0
    %vm534 = vcmp.eq.f32.partialorder %v486, 1.0
    %vm535 = vcmp.eq.f32.partialorder %v487, 1.0
    %vm536 = vcmp.eq.f32.partialorder %v488, 1.0
    %vm537 = vcmp.eq.f32.partialorder %v489, 1.0
    %vm538 = vcmp.eq.f32.partialorder %v490, 1.0
    %vm539 = vcmp.eq.f32.partialorder %v491, 1.0
    %vm540 = vcmp.eq.f32.partialorder %v492, 1.0
    %vm541 = vcmp.eq.f32.partialorder %v493, 1.0
    %vm542 = vcmp.eq.f32.partialorder %v494, 1.0
    %vm543 = vcmp.eq.f32.partialorder %v495, 1.0
    %v544 = vsel %vm528, %v158, 0.0
    %v545 = vsel %vm529, %v160, 0.0
    %v546 = vsel %vm530, %v163, 0.0
    %v547 = vsel %vm531, %v165, 0.0
    %v548 = vsel %vm532, %v168, 0.0
    %v549 = vsel %vm533, %v170, 0.0
    %v550 = vsel %vm534, %v173, 0.0
    %v551 = vsel %vm535, %v175, 0.0
    %v552 = vsel %vm536, %v178, 0.0
    %v553 = vsel %vm537, %v180, 0.0
    %v554 = vsel %vm538, %v183, 0.0
    %v555 = vsel %vm539, %v185, 0.0
    %v556 = vsel %vm540, %v188, 0.0
    %v557 = vsel %vm541, %v190, 0.0
    %v558 = vsel %vm542, %v193, 0.0
    %v559 = vsel %vm543, %v195, 0.0
    %vm560 = vcmp.eq.f32.partialorder %v480, 2.0
    %vm561 = vcmp.eq.f32.partialorder %v481, 2.0
    %vm562 = vcmp.eq.f32.partialorder %v482, 2.0
    %vm563 = vcmp.eq.f32.partialorder %v483, 2.0
    %vm564 = vcmp.eq.f32.partialorder %v484, 2.0
    %vm565 = vcmp.eq.f32.partialorder %v485, 2.0
    %vm566 = vcmp.eq.f32.partialorder %v486, 2.0
    %vm567 = vcmp.eq.f32.partialorder %v487, 2.0
    %vm568 = vcmp.eq.f32.partialorder %v488, 2.0
    %vm569 = vcmp.eq.f32.partialorder %v489, 2.0
    %vm570 = vcmp.eq.f32.partialorder %v490, 2.0
    %vm571 = vcmp.eq.f32.partialorder %v491, 2.0
    %vm572 = vcmp.eq.f32.partialorder %v492, 2.0
    %vm573 = vcmp.eq.f32.partialorder %v493, 2.0
    %vm574 = vcmp.eq.f32.partialorder %v494, 2.0
    %vm575 = vcmp.eq.f32.partialorder %v495, 2.0
    %v576 = vsel %vm560, %v158, 0.0
    %v577 = vsel %vm561, %v160, 0.0
    %v578 = vsel %vm562, %v163, 0.0
    %v579 = vsel %vm563, %v165, 0.0
    %v580 = vsel %vm564, %v168, 0.0
    %v581 = vsel %vm565, %v170, 0.0
    %v582 = vsel %vm566, %v173, 0.0
    %v583 = vsel %vm567, %v175, 0.0
    %v584 = vsel %vm568, %v178, 0.0
    %v585 = vsel %vm569, %v180, 0.0
    %v586 = vsel %vm570, %v183, 0.0
    %v587 = vsel %vm571, %v185, 0.0
    %v588 = vsel %vm572, %v188, 0.0
    %v589 = vsel %vm573, %v190, 0.0
    %v590 = vsel %vm574, %v193, 0.0
    %v591 = vsel %vm575, %v195, 0.0
    %vm592 = vcmp.eq.f32.partialorder %v480, 3.0
    %vm593 = vcmp.eq.f32.partialorder %v481, 3.0
    %vm594 = vcmp.eq.f32.partialorder %v482, 3.0
    %vm595 = vcmp.eq.f32.partialorder %v483, 3.0
    %vm596 = vcmp.eq.f32.partialorder %v484, 3.0
    %vm597 = vcmp.eq.f32.partialorder %v485, 3.0
    %vm598 = vcmp.eq.f32.partialorder %v486, 3.0
    %vm599 = vcmp.eq.f32.partialorder %v487, 3.0
    %vm600 = vcmp.eq.f32.partialorder %v488, 3.0
    %vm601 = vcmp.eq.f32.partialorder %v489, 3.0
    %vm602 = vcmp.eq.f32.partialorder %v490, 3.0
    %vm603 = vcmp.eq.f32.partialorder %v491, 3.0
    %vm604 = vcmp.eq.f32.partialorder %v492, 3.0
    %vm605 = vcmp.eq.f32.partialorder %v493, 3.0
    %vm606 = vcmp.eq.f32.partialorder %v494, 3.0
    %vm607 = vcmp.eq.f32.partialorder %v495, 3.0
    %v608 = vsel %vm592, %v158, 0.0
    %v609 = vsel %vm593, %v160, 0.0
    %v610 = vsel %vm594, %v163, 0.0
    %v611 = vsel %vm595, %v165, 0.0
    %v612 = vsel %vm596, %v168, 0.0
    %v613 = vsel %vm597, %v170, 0.0
    %v614 = vsel %vm598, %v173, 0.0
    %v615 = vsel %vm599, %v175, 0.0
    %v616 = vsel %vm600, %v178, 0.0
    %v617 = vsel %vm601, %v180, 0.0
    %v618 = vsel %vm602, %v183, 0.0
    %v619 = vsel %vm603, %v185, 0.0
    %v620 = vsel %vm604, %v188, 0.0
    %v621 = vsel %vm605, %v190, 0.0
    %v622 = vsel %vm606, %v193, 0.0
    %v623 = vsel %vm607, %v195, 0.0
    %640 = vrot.lane.b32.xlu0 %v544, 32
    %v641 = vpop.permute.xlu0 %640
    %642 = vrot.lane.b32.xlu0 %v545, 32
    %v643 = vpop.permute.xlu0 %642
    %644 = vrot.lane.b32.xlu0 %v546, 32
    %v645 = vpop.permute.xlu0 %644
    %646 = vrot.lane.b32.xlu0 %v547, 32
    %v647 = vpop.permute.xlu0 %646
    %648 = vrot.lane.b32.xlu0 %v548, 32
    %v649 = vpop.permute.xlu0 %648
    %650 = vrot.lane.b32.xlu0 %v549, 32
    %v651 = vpop.permute.xlu0 %650
    %652 = vrot.lane.b32.xlu0 %v550, 32
    %v653 = vpop.permute.xlu0 %652
    %654 = vrot.lane.b32.xlu0 %v551, 32
    %v655 = vpop.permute.xlu0 %654
    %656 = vrot.lane.b32.xlu0 %v552, 32
    %v657 = vpop.permute.xlu0 %656
    %658 = vrot.lane.b32.xlu0 %v553, 32
    %v659 = vpop.permute.xlu0 %658
    %660 = vrot.lane.b32.xlu0 %v554, 32
    %v661 = vpop.permute.xlu0 %660
    %662 = vrot.lane.b32.xlu0 %v555, 32
    %v663 = vpop.permute.xlu0 %662
    %664 = vrot.lane.b32.xlu0 %v556, 32
    %v665 = vpop.permute.xlu0 %664
    %666 = vrot.lane.b32.xlu0 %v557, 32
    %v667 = vpop.permute.xlu0 %666
    %668 = vrot.lane.b32.xlu0 %v558, 32
    %v669 = vpop.permute.xlu0 %668
    %670 = vrot.lane.b32.xlu0 %v559, 32
    %v671 = vpop.permute.xlu0 %670
    %704 = vrot.lane.b32.xlu0 %v576, 64
    %v705 = vpop.permute.xlu0 %704
    %706 = vrot.lane.b32.xlu0 %v577, 64
    %v707 = vpop.permute.xlu0 %706
    %708 = vrot.lane.b32.xlu0 %v578, 64
    %v709 = vpop.permute.xlu0 %708
    %710 = vrot.lane.b32.xlu0 %v579, 64
    %v711 = vpop.permute.xlu0 %710
    %712 = vrot.lane.b32.xlu0 %v580, 64
    %v713 = vpop.permute.xlu0 %712
    %714 = vrot.lane.b32.xlu0 %v581, 64
    %v715 = vpop.permute.xlu0 %714
    %716 = vrot.lane.b32.xlu0 %v582, 64
    %v717 = vpop.permute.xlu0 %716
    %718 = vrot.lane.b32.xlu0 %v583, 64
    %v719 = vpop.permute.xlu0 %718
    %720 = vrot.lane.b32.xlu0 %v584, 64
    %v721 = vpop.permute.xlu0 %720
    %722 = vrot.lane.b32.xlu0 %v585, 64
    %v723 = vpop.permute.xlu0 %722
    %724 = vrot.lane.b32.xlu0 %v586, 64
    %v725 = vpop.permute.xlu0 %724
    %726 = vrot.lane.b32.xlu0 %v587, 64
    %v727 = vpop.permute.xlu0 %726
    %728 = vrot.lane.b32.xlu0 %v588, 64
    %v729 = vpop.permute.xlu0 %728
    %730 = vrot.lane.b32.xlu0 %v589, 64
    %v731 = vpop.permute.xlu0 %730
    %732 = vrot.lane.b32.xlu0 %v590, 64
    %v733 = vpop.permute.xlu0 %732
    %734 = vrot.lane.b32.xlu0 %v591, 64
    %v735 = vpop.permute.xlu0 %734
    %768 = vrot.lane.b32.xlu0 %v608, 96
    %v769 = vpop.permute.xlu0 %768
    %770 = vrot.lane.b32.xlu0 %v609, 96
    %v771 = vpop.permute.xlu0 %770
    %772 = vrot.lane.b32.xlu0 %v610, 96
    %v773 = vpop.permute.xlu0 %772
    %774 = vrot.lane.b32.xlu0 %v611, 96
    %v775 = vpop.permute.xlu0 %774
    %776 = vrot.lane.b32.xlu0 %v612, 96
    %v777 = vpop.permute.xlu0 %776
    %778 = vrot.lane.b32.xlu0 %v613, 96
    %v779 = vpop.permute.xlu0 %778
    %780 = vrot.lane.b32.xlu0 %v614, 96
    %v781 = vpop.permute.xlu0 %780
    %782 = vrot.lane.b32.xlu0 %v615, 96
    %v783 = vpop.permute.xlu0 %782
    %784 = vrot.lane.b32.xlu0 %v616, 96
    %v785 = vpop.permute.xlu0 %784
    %786 = vrot.lane.b32.xlu0 %v617, 96
    %v787 = vpop.permute.xlu0 %786
    %788 = vrot.lane.b32.xlu0 %v618, 96
    %v789 = vpop.permute.xlu0 %788
    %790 = vrot.lane.b32.xlu0 %v619, 96
    %v791 = vpop.permute.xlu0 %790
    %792 = vrot.lane.b32.xlu0 %v620, 96
    %v793 = vpop.permute.xlu0 %792
    %794 = vrot.lane.b32.xlu0 %v621, 96
    %v795 = vpop.permute.xlu0 %794
    %796 = vrot.lane.b32.xlu0 %v622, 96
    %v797 = vpop.permute.xlu0 %796
    %798 = vrot.lane.b32.xlu0 %v623, 96
    %v799 = vpop.permute.xlu0 %798
    %vm816 = vcmask 261120
    %v817 = vsel %vm816, %v512, %v641
    %v818 = vsel %vm816, %v513, %v643
    %v819 = vsel %vm816, %v514, %v645
    %v820 = vsel %vm816, %v515, %v647
    %v821 = vsel %vm816, %v516, %v649
    %v822 = vsel %vm816, %v517, %v651
    %v823 = vsel %vm816, %v518, %v653
    %v824 = vsel %vm816, %v519, %v655
    %v825 = vsel %vm816, %v520, %v657
    %v826 = vsel %vm816, %v521, %v659
    %v827 = vsel %vm816, %v522, %v661
    %v828 = vsel %vm816, %v523, %v663
    %v829 = vsel %vm816, %v524, %v665
    %v830 = vsel %vm816, %v525, %v667
    %v831 = vsel %vm816, %v526, %v669
    %v832 = vsel %vm816, %v527, %v671
    %v833 = vsel %vm123, %v817, %v705
    %v834 = vsel %vm123, %v818, %v707
    %v835 = vsel %vm123, %v819, %v709
    %v836 = vsel %vm123, %v820, %v711
    %v837 = vsel %vm123, %v821, %v713
    %v838 = vsel %vm123, %v822, %v715
    %v839 = vsel %vm123, %v823, %v717
    %v840 = vsel %vm123, %v824, %v719
    %v841 = vsel %vm123, %v825, %v721
    %v842 = vsel %vm123, %v826, %v723
    %v843 = vsel %vm123, %v827, %v725
    %v844 = vsel %vm123, %v828, %v727
    %v845 = vsel %vm123, %v829, %v729
    %v846 = vsel %vm123, %v830, %v731
    %v847 = vsel %vm123, %v831, %v733
    %v848 = vsel %vm123, %v832, %v735
    %vm849 = vcmask 785408
    %v850 = vsel %vm849, %v833, %v769
    %v851 = vsel %vm849, %v834, %v771
    %v852 = vsel %vm849, %v835, %v773
    %v853 = vsel %vm849, %v836, %v775
    %v854 = vsel %vm849, %v837, %v777
    %v855 = vsel %vm849, %v838, %v779
    %v856 = vsel %vm849, %v839, %v781
    %v857 = vsel %vm849, %v840, %v783
    %v858 = vsel %vm849, %v841, %v785
    %v859 = vsel %vm849, %v842, %v787
    %v860 = vsel %vm849, %v843, %v789
    %v861 = vsel %vm849, %v844, %v791
    %v862 = vsel %vm849, %v845, %v793
    %v863 = vsel %vm849, %v846, %v795
    %v864 = vsel %vm849, %v847, %v797
    %v865 = vsel %vm849, %v848, %v799
    %v866 = vadd.f32 %v850, %v425
    %v867 = vadd.f32 %v851, %v427
    %v868 = vadd.f32 %v852, %v430
    %v869 = vadd.f32 %v853, %v432
    %v870 = vadd.f32 %v854, %v435
    %v871 = vadd.f32 %v855, %v437
    %v872 = vadd.f32 %v856, %v440
    %v873 = vadd.f32 %v857, %v442
    %v874 = vadd.f32 %v858, %v445
    %v875 = vadd.f32 %v859, %v447
    %v876 = vadd.f32 %v860, %v450
    %v877 = vadd.f32 %v861, %v452
    %v878 = vadd.f32 %v862, %v455
    %v879 = vadd.f32 %v863, %v457
    %v880 = vadd.f32 %v864, %v460
    %v881 = vadd.f32 %v865, %v462
    %v882 = vmax.f32 %v866, 0.0
    %v883 = vmax.f32 %v867, 0.0
    %v884 = vmax.f32 %v868, 0.0
    %v885 = vmax.f32 %v869, 0.0
    %v886 = vmax.f32 %v870, 0.0
    %v887 = vmax.f32 %v871, 0.0
    %v888 = vmax.f32 %v872, 0.0
    %v889 = vmax.f32 %v873, 0.0
    %v890 = vmax.f32 %v874, 0.0
    %v891 = vmax.f32 %v875, 0.0
    %v892 = vmax.f32 %v876, 0.0
    %v893 = vmax.f32 %v877, 0.0
    %v894 = vmax.f32 %v878, 0.0
    %v895 = vmax.f32 %v879, 0.0
    %v896 = vmax.f32 %v880, 0.0
    %v897 = vmax.f32 %v881, 0.0
    %898 = vst [vmem:[#allocation2] sm:$0xff] %v882
    %899 = vst [vmem:[#allocation2 + $0x8] sm:$0xff] %v883
    %900 = vst [vmem:[#allocation2 + $0x10] sm:$0xff] %v884
    %901 = vst [vmem:[#allocation2 + $0x18] sm:$0xff] %v885
    %902 = vst [vmem:[#allocation2 + $0x20] sm:$0xff] %v886
    %903 = vst [vmem:[#allocation2 + $0x28] sm:$0xff] %v887
    %904 = vst [vmem:[#allocation2 + $0x30] sm:$0xff] %v888
    %905 = vst [vmem:[#allocation2 + $0x38] sm:$0xff] %v889
    %906 = vst [vmem:[#allocation2 + $0x40] sm:$0xff] %v890
    %907 = vst [vmem:[#allocation2 + $0x48] sm:$0xff] %v891
    %908 = vst [vmem:[#allocation2 + $0x50] sm:$0xff] %v892
    %909 = vst [vmem:[#allocation2 + $0x58] sm:$0xff] %v893
    %910 = vst [vmem:[#allocation2 + $0x60] sm:$0xff] %v894
    %911 = vst [vmem:[#allocation2 + $0x68] sm:$0xff] %v895
    %912 = vst [vmem:[#allocation2 + $0x70] sm:$0xff] %v896
    %913 = vst [vmem:[#allocation2 + $0x78] sm:$0xff] %v897
    // Predicated region
    $region34: #{tpu_custom_call.1} parent=1 // pred_check
      _
    $region35: #{tpu_custom_call.1} parent=1 // pred_check_branch
      %915 = sbr.rel (0) target = $region37
    $region36: #{tpu_custom_call.1} parent=1 // pred_region
      %917 = vsyncadd [#allocation3], 0
      %s918 = sshll.u32 [#allocation2], 4
      %s919 = int_to_ptr.vmem [resolvable:$true] %s918
      %s920 = sshll.u32 %s8, 4
      %s921 = int_to_ptr.hbm [resolvable:$true] %s920
      %926 = dma.vmem_to_hbm [thread:$0]  %s919, 2048, %s921, [#allocation3], 128, 128, 8
    $region37: #{tpu_custom_call.1} parent=1 // pred_fallthru
      _
    // Predicated region
    $region38: #{tpu_custom_call.1} parent=1 // pred_check
      _
    $region39: #{tpu_custom_call.1} parent=1 // pred_check_branch
      %928 = sbr.rel (0) target = $region41
    $region40: #{tpu_custom_call.1} parent=1 // pred_region
      %930 = dma.done [#allocation3], 2048
    $region41: #{tpu_custom_call.1} parent=1 // pred_fallthru
      _
    %931 = vsyncpa [#allocation3], 1

</llo_original>
